<compile_context>
chip_gen: v7x
topology: tpu7x:2x2x1
jax: 0.10.0
libtpu: 0.0.40
codegen_flags: <defaults>
</compile_context>

<pallas_src>
import jax
import jax.numpy as jnp
from jax.experimental import pallas as pl
from jax.experimental.pallas import tpu as pltpu


_ROW_ALIGN = 16  # packed-row alignment (safe for bf16 (16,128) native tiling)


def _cdiv(a, b):
    return (a + b - 1) // b


def _round_up(a, b):
    return _cdiv(a, b) * b


# ----------------------------------------------------------------------------
# Fused kernel: one batch tile -> hidden -> ReLU -> output, all in VMEM.
# ----------------------------------------------------------------------------
def _mlp_kernel(x_ref, w1_ref, w2_ref, y_ref):
    # x_ref : (trows, pack*Din)          batch tile (packed rows), input dtype
    # w1_ref: (pack*Din, pack*Hid)       block-diag replicated W1^T (bf16/f32)
    # w2_ref: (pack*Hid, pack*Dout)      block-diag replicated W2^T (bf16/f32)
    # y_ref : (trows, pack*Dout)         lane-dense output tile
    h = jnp.dot(x_ref[...].astype(w1_ref.dtype), w1_ref[...],
                preferred_element_type=jnp.float32)
    h = jnp.maximum(h, 0.0)                                    # ReLU (VPU)
    y = jnp.dot(h.astype(w2_ref.dtype), w2_ref[...],
                preferred_element_type=jnp.float32)
    y_ref[...] = y.astype(y_ref.dtype)


# ----------------------------------------------------------------------------
# One-time weight preparation: transpose, block-diag pack, cast.
# ----------------------------------------------------------------------------
def prepare_mlp_weights(params, *, compute_dtype=jnp.bfloat16):
    """Returns (w1_blk, w2_blk, pack) ready for mlp_forward. Call once."""
    w1 = jnp.asarray(params["w1"], jnp.float32)   # (Hid, Din)  torch layout
    w2 = jnp.asarray(params["w2"], jnp.float32)   # (Dout, Hid) torch layout
    hid, din = w1.shape
    dout, hid2 = w2.shape
    assert hid2 == hid

    # Pack `pack` batch rows per kernel row so the output row width becomes a
    # multiple of 128 lanes (unmasked vector stores).  Dout=64 -> pack=2.
    if dout < 128 and 128 % dout == 0:
        pack = min(128 // dout, 8)
    else:
        pack = 1

    eye = jnp.eye(pack, dtype=jnp.float32)
    w1_blk = jnp.kron(eye, w1.T).astype(compute_dtype)   # (pack*Din, pack*Hid)
    w2_blk = jnp.kron(eye, w2.T).astype(compute_dtype)   # (pack*Hid, pack*Dout)
    return w1_blk, w2_blk, pack


# ----------------------------------------------------------------------------
# Forward wrapper
# ----------------------------------------------------------------------------
def mlp_forward(x, w1_blk, w2_blk, *, pack, out_dtype=jnp.float32,
                max_tile_rows=1024, min_tiles=2):
    """x: (B, input_size) -> y: (B, output_size). Matches MLP.forward."""
    B, din = x.shape
    p_din, p_hid = w1_blk.shape
    p_hid2, p_dout = w2_blk.shape
    assert p_hid == p_hid2 and p_din == pack * din
    hid = p_hid // pack
    dout = p_dout // pack

    # ---- batch tile selection: minimize padding, keep tiles <= max_tile_rows,
    #      and use >= min_tiles tiles when possible (both v7x TensorCores). ----
    unit = pack * _ROW_ALIGN                       # batch rows per aligned unit
    n_units = _cdiv(B, unit)
    max_units_per_tile = max(1, max_tile_rows // unit)
    n_tiles = _cdiv(n_units, max_units_per_tile)
    if n_tiles < min_tiles <= n_units:
        n_tiles = min_tiles
    units_per_tile = _cdiv(n_units, n_tiles)
    tb = units_per_tile * unit                     # batch rows per grid tile
    Bp = n_tiles * tb                              # padded batch

    # Pad only when needed (skipped entirely for tile-aligned B).
    xp = x if Bp == B else jnp.pad(x, ((0, Bp - B), (0, 0)))
    # Bytes-identical reshape: pair `pack` consecutive rows into one packed row.
    xp = xp.reshape(Bp // pack, p_din)

    trows = tb // pack                             # packed rows per tile
    flops = 2 * Bp * (din * hid + hid * dout)
    bytes_accessed = (Bp * din * x.dtype.itemsize
                      + w1_blk.size * w1_blk.dtype.itemsize
                      + w2_blk.size * w2_blk.dtype.itemsize
                      + Bp * dout * jnp.dtype(out_dtype).itemsize)

    y_packed = pl.pallas_call(
        _mlp_kernel,
        out_shape=jax.ShapeDtypeStruct((Bp // pack, p_dout), out_dtype),
        grid_spec=pltpu.PrefetchScalarGridSpec(
            num_scalar_prefetch=0,
            grid=(n_tiles,),
            in_specs=[
                pl.BlockSpec((trows, p_din), lambda i: (i, 0)),   # x tile
                pl.BlockSpec((p_din, p_hid), lambda i: (0, 0)),   # whole W1 blk
                pl.BlockSpec((p_hid, p_dout), lambda i: (0, 0)),  # whole W2 blk
            ],
            out_specs=pl.BlockSpec((trows, p_dout), lambda i: (i, 0)),
        ),
        compiler_params=pltpu.CompilerParams(
            dimension_semantics=("parallel",),     # shard batch tiles across TCs
            vmem_limit_bytes=32 * 1024 * 1024,
        ),
        cost_estimate=pl.CostEstimate(
            flops=flops, transcendentals=0, bytes_accessed=bytes_accessed),
    )(xp, w1_blk, w2_blk)

    y = y_packed.reshape(Bp, dout)                 # bytes-identical un-pack
    return y[:B] if Bp != B else y


# ----------------------------------------------------------------------------
# Parameter construction (PyTorch nn.Linear(bias=False)-style uniform init)
# ----------------------------------------------------------------------------
def init_mlp_params(key, input_size=4, hidden_size=16, output_size=64):
    k1, k2 = jax.random.split(key)
    b1 = 1.0 / jnp.sqrt(jnp.asarray(input_size, jnp.float32))
    b2 = 1.0 / jnp.sqrt(jnp.asarray(hidden_size, jnp.float32))
    return {
        "w1": jax.random.uniform(k1, (hidden_size, input_size), jnp.float32, -b1, b1),
        "w2": jax.random.uniform(k2, (output_size, hidden_size), jnp.float32, -b2, b2),
    }


if __name__ == "__main__":
    # Shapes consistent with the module defaults: input_size=4, hidden=16, output=64
    B, INPUT_SIZE, HIDDEN_SIZE, OUTPUT_SIZE = 2, 4, 16, 64

    key = jax.random.PRNGKey(0)
    key, pkey, xkey, xkey2 = jax.random.split(key, 4)
    params = init_mlp_params(pkey, INPUT_SIZE, HIDDEN_SIZE, OUTPUT_SIZE)
    x = jax.random.normal(xkey, (B, INPUT_SIZE), jnp.float32)

    fwd = jax.jit(mlp_forward,
                  static_argnames=("pack", "out_dtype", "max_tile_rows", "min_tiles"))

    # Pure-JAX reference (same forward math).
    y_ref = jnp.maximum(x @ params["w1"].T, 0.0) @ params["w2"].T

    # ---- f32 compute path: bit-level sanity check of the fused kernel ----
    w1_f32, w2_f32, pack = prepare_mlp_weights(params, compute_dtype=jnp.float32)
    y_f32 = fwd(x, w1_f32, w2_f32, pack=pack)
    jax.block_until_ready(y_f32)
    assert y_f32.shape == (B, OUTPUT_SIZE), y_f32.shape
    assert bool(jnp.all(jnp.isfinite(y_f32)))
    assert bool(jnp.allclose(y_f32, y_ref, atol=1e-5, rtol=1e-5)), (
        float(jnp.max(jnp.abs(y_f32 - y_ref))))

    # ---- default bf16 compute path (halves weight/operand traffic) ----
    w1_bf, w2_bf, pack_bf = prepare_mlp_weights(params)  # bf16
    y_bf = fwd(x, w1_bf, w2_bf, pack=pack_bf)
    jax.block_until_ready(y_bf)
    assert y_bf.shape == (B, OUTPUT_SIZE)
    assert bool(jnp.all(jnp.isfinite(y_bf)))
    assert bool(jnp.allclose(y_bf, y_ref, atol=5e-2, rtol=5e-2)), (
        float(jnp.max(jnp.abs(y_bf - y_ref))))

    # ---- ragged batch (exercises minimal padding + slice-off path) ----
    x5 = jax.random.normal(xkey2, (5, INPUT_SIZE), jnp.float32)
    y5 = fwd(x5, w1_f32, w2_f32, pack=pack)
    jax.block_until_ready(y5)
    y5_ref = jnp.maximum(x5 @ params["w1"].T, 0.0) @ params["w2"].T
    assert y5.shape == (5, OUTPUT_SIZE)
    assert bool(jnp.allclose(y5, y5_ref, atol=1e-5, rtol=1e-5)), (
        float(jnp.max(jnp.abs(y5 - y5_ref))))

    print("KERNEL_OK")
</pallas_src>

<mosaic_0001>
module attributes {stable_mosaic.version = 11 : i64} {
  func.func @_mlp_kernel(%arg0: i32, %arg1: memref<16x8xf32, #tpu.memory_space<vmem>>, %arg2: memref<8x32xf32, #tpu.memory_space<vmem>>, %arg3: memref<32x128xf32, #tpu.memory_space<vmem>>, %arg4: memref<16x128xf32, #tpu.memory_space<vmem>>) attributes {dimension_semantics = [#tpu.dimension_semantics<parallel>], iteration_bounds = array<i64: 1>, scalar_prefetch = 0 : i64, scratch_operands = 0 : i64, tpu.core_type = #tpu.core_type<tc>, window_params = [{transform_indices = @transform_0, window_bounds = array<i64: 16, 8>}, {pipeline_mode = #tpu.pipeline_mode<synchronous>, transform_indices = @transform_1, window_bounds = array<i64: 8, 32>}, {pipeline_mode = #tpu.pipeline_mode<synchronous>, transform_indices = @transform_2, window_bounds = array<i64: 32, 128>}, {transform_indices = @transform_3, window_bounds = array<i64: 16, 128>}]} {
    %c0 = arith.constant 0 : index
    %c0_0 = arith.constant 0 : index
    %0 = vector.load %arg1[%c0, %c0_0] : memref<16x8xf32, #tpu.memory_space<vmem>>, vector<16x8xf32>
    %c0_1 = arith.constant 0 : index
    %c0_2 = arith.constant 0 : index
    %1 = vector.load %arg2[%c0_1, %c0_2] : memref<8x32xf32, #tpu.memory_space<vmem>>, vector<8x32xf32>
    %cst = arith.constant dense<0.000000e+00> : vector<16x32xf32>
    %2 = tpu.matmul %0, %1, %cst {dimension_numbers = #tpu.dot_dimension_numbers<[1], [0], [0], [1], [0, 0, 1, 1], [], []>} : vector<16x8xf32>, vector<8x32xf32>, vector<16x32xf32> -> vector<16x32xf32>
    %cst_3 = arith.constant 0.000000e+00 : f32
    %3 = vector.broadcast %cst_3 : f32 to vector<16x32xf32>
    %4 = arith.maximumf %2, %3 : vector<16x32xf32>
    %c0_4 = arith.constant 0 : index
    %c0_5 = arith.constant 0 : index
    %5 = vector.load %arg3[%c0_4, %c0_5] : memref<32x128xf32, #tpu.memory_space<vmem>>, vector<32x128xf32>
    %cst_6 = arith.constant dense<0.000000e+00> : vector<16x128xf32>
    %6 = tpu.matmul %4, %5, %cst_6 {dimension_numbers = #tpu.dot_dimension_numbers<[1], [0], [0], [1], [0, 0, 1, 1], [], []>} : vector<16x32xf32>, vector<32x128xf32>, vector<16x128xf32> -> vector<16x128xf32>
    %c0_7 = arith.constant 0 : index
    %c0_8 = arith.constant 0 : index
    %7 = vector.load %arg4[%c0_7, %c0_8] : memref<16x128xf32, #tpu.memory_space<vmem>>, vector<16x128xf32>
    tpu.vector_store %arg4[%c0_7, %c0_8], %6 {strides = array<i32>} : memref<16x128xf32, #tpu.memory_space<vmem>>, vector<16x128xf32>,
    return
  }
  func.func @transform_0(%arg0: i32) -> (i32, i32) {
    %c0_i32 = arith.constant 0 : i32
    %c0_i32_0 = arith.constant 0 : i32
    return %arg0, %c0_i32 : i32, i32
  }
  func.func @transform_1(%arg0: i32) -> (i32, i32) {
    %c0_i32 = arith.constant 0 : i32
    %c0_i32_0 = arith.constant 0 : i32
    %c0_i32_1 = arith.constant 0 : i32
    return %c0_i32, %c0_i32_0 : i32, i32
  }
  func.func @transform_2(%arg0: i32) -> (i32, i32) {
    %c0_i32 = arith.constant 0 : i32
    %c0_i32_0 = arith.constant 0 : i32
    %c0_i32_1 = arith.constant 0 : i32
    return %c0_i32, %c0_i32_0 : i32, i32
  }
  func.func @transform_3(%arg0: i32) -> (i32, i32) {
    %c0_i32 = arith.constant 0 : i32
    %c0_i32_0 = arith.constant 0 : i32
    return %arg0, %c0_i32 : i32, i32
  }
}

</mosaic_0001>

<llo_original>
// kernel: mlp_forward.1
$region0: #{mlp_forward.1}
  #allocation0 [shape = 'u32[]', space=smem, size = 0x4, offset = 0x4, fixed_abs, tag = 'smem constant byte address 0x4 - core index']
  #allocation1 [shape = 'u32[144,128]{1,0:T(1,128)}', space=vmem, size = 0x12000, scoped, tag = 'internal scratch']
  %s0 = inlined_call_operand.vmem [shape: f32[16,8], index: 0, kind: input, shape index: {}]
  %s1 = inlined_call_operand.vmem [shape: f32[8,32], index: 1, kind: input, shape index: {}]
  %s2 = inlined_call_operand.vmem [shape: f32[32,128], index: 2, kind: input, shape index: {}]
  %s3 = inlined_call_operand.vmem [shape: f32[16,128], index: 3, kind: output, shape index: {}]
  %s4 = sld [smem:[#allocation0]]
  $region22: #{mlp_forward.1} parent=0
    _
  %s6 = ssub.s32 1, %s4
  %s7 = scalar_select 0, %s6, %s4
  // Predicated region
  $region2: #{mlp_forward.1} parent=0 // pred_check
    _
  $region3: #{mlp_forward.1} parent=0 // pred_check_branch
    %9 = sbr.rel (0) target = $region5
  $region4: #{mlp_forward.1} parent=0 // pred_region
    _
  $region5: #{mlp_forward.1} parent=0 // pred_fallthru
    _
  // Predicated region
  $region6: #{mlp_forward.1} parent=0 // pred_check
    _
  $region7: #{mlp_forward.1} parent=0 // pred_check_branch
    %11 = sbr.rel (0) target = $region9
  $region8: #{mlp_forward.1} parent=0 // pred_region
    _
  $region9: #{mlp_forward.1} parent=0 // pred_fallthru
    _
  // Predicated region
  $region10: #{mlp_forward.1} parent=0 // pred_check
    _
  $region11: #{mlp_forward.1} parent=0 // pred_check_branch
    %13 = sbr.rel (0) target = $region13
  $region12: #{mlp_forward.1} parent=0 // pred_region
    _
  $region13: #{mlp_forward.1} parent=0 // pred_fallthru
    _
  %v14 = vld [vmem:[%s0] sm:$0xff]
  %v15 = vld [vmem:[%s0 + $0x8] sm:$0xff]
  %v16 = vld [vmem:[%s1] sm:$0xff]
  %vm17 = vcmask 64512
  %v19 = vsel %vm17, %v14, 0
  %v22 = vsel %vm17, %v15, 0
  %24 = vmatprep.subr.mxu0 0.0
  %25 = vmatpush1.msra.mxu0 %v16
  %26 = vmatprep.subr.mxu0 0.0
  %27 = vmatpush1.msra.mxu0 0.0
  %28 = vmatprep.subr.mxu0 0.0
  %29 = vmatpush1.msra.mxu0 0.0
  %30 = vmatprep.subr.mxu0 0.0
  %31 = vmatpush1.msra.mxu0 0.0
  %32 = vmatprep.subr.mxu0 0.0
  %33 = vmatpush1.msra.mxu0 0.0
  %34 = vmatprep.subr.mxu0 0.0
  %35 = vmatpush1.msra.mxu0 0.0
  %36 = vmatprep.subr.mxu0 0.0
  %37 = vmatpush1.msra.mxu0 0.0
  %38 = vmatprep.subr.mxu0 0.0
  %39 = vmatpush1.msra.mxu0 0.0
  %40 = vmatprep.subr.mxu0 0.0
  %41 = vmatpush1.msra.mxu0 0.0
  %42 = vmatprep.subr.mxu0 0.0
  %43 = vmatpush1.msra.mxu0 0.0
  %44 = vmatprep.subr.mxu0 0.0
  %45 = vmatpush1.msra.mxu0 0.0
  %46 = vmatprep.subr.mxu0 0.0
  %47 = vmatpush1.msra.mxu0 0.0
  %48 = vmatprep.subr.mxu0 0.0
  %49 = vmatpush1.msra.mxu0 0.0
  %50 = vmatprep.subr.mxu0 0.0
  %51 = vmatpush1.msra.mxu0 0.0
  %52 = vmatprep.subr.mxu0 0.0
  %53 = vmatpush1.msra.mxu0 0.0
  %54 = vmatprep.subr.mxu0 0.0
  %55 = vmatpush1.msra.mxu0 0.0
  %56 = vmatprep.subr.mxu0 0.0
  %57 = vmatpush1.msra.mxu0 0.0
  %58 = vmatprep.subr.mxu0 0.0
  %59 = vmatpush1.msra.mxu0 0.0
  %60 = vmatprep.subr.mxu0 0.0
  %61 = vmatpush1.msra.mxu0 0.0
  %62 = vmatprep.subr.mxu0 0.0
  %63 = vmatpush1.msra.mxu0 0.0
  %64 = vmatprep.subr.mxu0 0.0
  %65 = vmatpush1.msra.mxu0 0.0
  %66 = vmatprep.subr.mxu0 0.0
  %67 = vmatpush1.msra.mxu0 0.0
  %68 = vmatprep.subr.mxu0 0.0
  %69 = vmatpush1.msra.mxu0 0.0
  %70 = vmatprep.subr.mxu0 0.0
  %71 = vmatpush1.msra.mxu0 0.0
  %72 = vmatprep.subr.mxu0 0.0
  %73 = vmatpush1.msra.mxu0 0.0
  %74 = vmatprep.subr.mxu0 0.0
  %75 = vmatpush1.msra.mxu0 0.0
  %76 = vmatprep.subr.mxu0 0.0
  %77 = vmatpush1.msra.mxu0 0.0
  %78 = vmatprep.subr.mxu0 0.0
  %79 = vmatpush1.msra.mxu0 0.0
  %80 = vmatprep.subr.mxu0 0.0
  %81 = vmatpush1.msra.mxu0 0.0
  %82 = vmatprep.subr.mxu0 0.0
  %83 = vmatpush1.msra.mxu0 0.0
  %84 = vmatprep.subr.mxu0 0.0
  %85 = vmatpush1.msra.mxu0 0.0
  %86 = vmatprep.subr.mxu0 0.0
  %87 = vmatpush1.msra.mxu0 0.0
  %88 = vmatprep.mubr.f32.mxu0 0.0
  %89 = vmatmul.mubr.f32.gmra.mrb[0].mxu0 %v19
  %v90 = vpop.f32.mrb[0].mxu0
  %v91 = vadd.f32 0.0, %v90
  %v92 = vpop.f32.mrb[0].mxu0
  %93 = vmatprep.mubr.f32.mxu0 0.0
  %94 = vmatmul.mubr.f32.gmra.mrb[0].mxu0 %v22
  %v95 = vpop.f32.mrb[0].mxu0
  %v96 = vadd.f32 0.0, %v95
  %v97 = vpop.f32.mrb[0].mxu0
  %98 = vdwg.mxu0
  %v99 = vmax.f32 %v91, 0.0
  %v100 = vmax.f32 %v96, 0.0
  %v101 = vld [vmem:[%s2] sm:$0xff]
  %v102 = vld [vmem:[%s2 + $0x8] sm:$0xff]
  %v103 = vld [vmem:[%s2 + $0x10] sm:$0xff]
  %v104 = vld [vmem:[%s2 + $0x18] sm:$0xff]
  %vm105 = vcmask 261120
  %v107 = vsel %vm105, %v99, 0
  %v110 = vsel %vm105, %v100, 0
  %112 = vmatprep.subr.mxu0 0.0
  %113 = vmatpush1.msra.mxu0 %v101
  %114 = vmatprep.subr.mxu0 0.0
  %115 = vmatpush1.msra.mxu0 %v102
  %116 = vmatprep.subr.mxu0 0.0
  %117 = vmatpush1.msra.mxu0 %v103
  %118 = vmatprep.subr.mxu0 0.0
  %119 = vmatpush1.msra.mxu0 %v104
  %120 = vmatprep.subr.mxu0 0.0
  %121 = vmatpush1.msra.mxu0 0.0
  %122 = vmatprep.subr.mxu0 0.0
  %123 = vmatpush1.msra.mxu0 0.0
  %124 = vmatprep.subr.mxu0 0.0
  %125 = vmatpush1.msra.mxu0 0.0
  %126 = vmatprep.subr.mxu0 0.0
  %127 = vmatpush1.msra.mxu0 0.0
  %128 = vmatprep.subr.mxu0 0.0
  %129 = vmatpush1.msra.mxu0 0.0
  %130 = vmatprep.subr.mxu0 0.0
  %131 = vmatpush1.msra.mxu0 0.0
  %132 = vmatprep.subr.mxu0 0.0
  %133 = vmatpush1.msra.mxu0 0.0
  %134 = vmatprep.subr.mxu0 0.0
  %135 = vmatpush1.msra.mxu0 0.0
  %136 = vmatprep.subr.mxu0 0.0
  %137 = vmatpush1.msra.mxu0 0.0
  %138 = vmatprep.subr.mxu0 0.0
  %139 = vmatpush1.msra.mxu0 0.0
  %140 = vmatprep.subr.mxu0 0.0
  %141 = vmatpush1.msra.mxu0 0.0
  %142 = vmatprep.subr.mxu0 0.0
  %143 = vmatpush1.msra.mxu0 0.0
  %144 = vmatprep.subr.mxu0 0.0
  %145 = vmatpush1.msra.mxu0 0.0
  %146 = vmatprep.subr.mxu0 0.0
  %147 = vmatpush1.msra.mxu0 0.0
  %148 = vmatprep.subr.mxu0 0.0
  %149 = vmatpush1.msra.mxu0 0.0
  %150 = vmatprep.subr.mxu0 0.0
  %151 = vmatpush1.msra.mxu0 0.0
  %152 = vmatprep.subr.mxu0 0.0
  %153 = vmatpush1.msra.mxu0 0.0
  %154 = vmatprep.subr.mxu0 0.0
  %155 = vmatpush1.msra.mxu0 0.0
  %156 = vmatprep.subr.mxu0 0.0
  %157 = vmatpush1.msra.mxu0 0.0
  %158 = vmatprep.subr.mxu0 0.0
  %159 = vmatpush1.msra.mxu0 0.0
  %160 = vmatprep.subr.mxu0 0.0
  %161 = vmatpush1.msra.mxu0 0.0
  %162 = vmatprep.subr.mxu0 0.0
  %163 = vmatpush1.msra.mxu0 0.0
  %164 = vmatprep.subr.mxu0 0.0
  %165 = vmatpush1.msra.mxu0 0.0
  %166 = vmatprep.subr.mxu0 0.0
  %167 = vmatpush1.msra.mxu0 0.0
  %168 = vmatprep.subr.mxu0 0.0
  %169 = vmatpush1.msra.mxu0 0.0
  %170 = vmatprep.subr.mxu0 0.0
  %171 = vmatpush1.msra.mxu0 0.0
  %172 = vmatprep.subr.mxu0 0.0
  %173 = vmatpush1.msra.mxu0 0.0
  %174 = vmatprep.subr.mxu0 0.0
  %175 = vmatpush1.msra.mxu0 0.0
  %176 = vmatprep.mubr.f32.mxu0 0.0
  %177 = vmatmul.mubr.f32.gmra.mrb[0].mxu0 %v107
  %v178 = vpop.f32.mrb[0].mxu0
  %v179 = vadd.f32 0.0, %v178
  %v180 = vpop.f32.mrb[0].mxu0
  %181 = vmatprep.mubr.f32.mxu0 0.0
  %182 = vmatmul.mubr.f32.gmra.mrb[0].mxu0 %v110
  %v183 = vpop.f32.mrb[0].mxu0
  %v184 = vadd.f32 0.0, %v183
  %v185 = vpop.f32.mrb[0].mxu0
  %186 = vdwg.mxu0
  %187 = vst [vmem:[%s3] sm:$0xff] %v179
  %188 = vst [vmem:[%s3 + $0x8] sm:$0xff] %v184
  // Predicated region
  $region14: #{mlp_forward.1} parent=0 // pred_check
    _
  $region15: #{mlp_forward.1} parent=0 // pred_check_branch
    %190 = sbr.rel (0) target = $region17
  $region16: #{mlp_forward.1} parent=0 // pred_region
    _
  $region17: #{mlp_forward.1} parent=0 // pred_fallthru
    _
  // Predicated region
  $region18: #{mlp_forward.1} parent=0 // pred_check
    _
  $region19: #{mlp_forward.1} parent=0 // pred_check_branch
    %192 = sbr.rel (0) target = $region21
  $region20: #{mlp_forward.1} parent=0 // pred_region
    _
  $region21: #{mlp_forward.1} parent=0 // pred_fallthru
    _

</llo_original>
